<compile_context>
chip_gen: v7x
topology: tpu7x:2x2x1
jax: 0.10.0
libtpu: 0.0.40
codegen_flags: <defaults>
</compile_context>

<pallas_src>
import functools

import jax
import jax.numpy as jnp
from jax import lax
from jax.experimental import pallas as pl
from jax.experimental.pallas import tpu as pltpu

LANES = 128
ROW_ALIGN = 8                   # sublane alignment -> all in-kernel slices are (8k, 128)
MAX_BLOCK_ROWS = 8192           # (8192,128) f32 block = 4 MiB
CHUNK_ROWS = 1024               # inner-loop chunk; bounds live temporaries to ~0.5 MiB each
LOG_CLAMP = -100.0              # PyTorch BCELoss clamps log terms at -100


def _bce_pos_terms(pm, am):
    """am*log(pm) + (1-am)*log(1-pm) with PyTorch-style clamps, in the reduced
    VALU form am*(log_p - log_1mp) + log_1mp.  pm=am=0 contributes exactly 0."""
    log_p = jnp.maximum(jnp.log(pm), LOG_CLAMP)
    log_1mp = jnp.maximum(jnp.log(1.0 - pm), LOG_CLAMP)
    return am * (log_p - log_1mp) + log_1mp


def _map_partials_kernel(pm_ref, am_ref, inter_ref, sum_ref, bce_ref,
                         *, block_rows, total_rows, chunk_rows, needs_mask):
    j = pl.program_id(0)

    @pl.when(j == 0)
    def _():
        inter_ref[...] = jnp.zeros_like(inter_ref)
        sum_ref[...] = jnp.zeros_like(sum_ref)
        bce_ref[...] = jnp.zeros_like(bce_ref)

    num_full = block_rows // chunk_rows
    rem_rows = block_rows - num_full * chunk_rows   # multiple of 8 by construction

    def chunk_contrib(r0, nrows, masked, carry):
        inter_acc, sum_acc, bce_acc = carry
        pm = pm_ref[pl.ds(r0, nrows), :].astype(jnp.float32)
        am = am_ref[pl.ds(r0, nrows), :].astype(jnp.float32)
        if masked:
            # Only the last (ragged) block pays this.  The select runs BEFORE any
            # arithmetic so unspecified VMEM rows (possibly Inf/NaN) contribute 0.
            valid_rows = total_rows - j * block_rows
            row = lax.broadcasted_iota(jnp.int32, pm.shape, 0) + r0
            keep = row < valid_rows
            pm = jnp.where(keep, pm, 0.0)
            am = jnp.where(keep, am, 0.0)
        inter_acc = inter_acc + jnp.sum(pm * am, axis=0, keepdims=True)
        sum_acc = sum_acc + jnp.sum(pm + am, axis=0, keepdims=True)
        bce_acc = bce_acc + jnp.sum(_bce_pos_terms(pm, am), axis=0, keepdims=True)
        return inter_acc, sum_acc, bce_acc

    def run_block(masked):
        zero = jnp.zeros((1, LANES), jnp.float32)
        carry = (zero, zero, zero)

        def body(c, carry):
            r0 = pl.multiple_of(c * chunk_rows, chunk_rows)
            return chunk_contrib(r0, chunk_rows, masked, carry)

        carry = lax.fori_loop(0, num_full, body, carry, unroll=True)
        if rem_rows > 0:
            carry = chunk_contrib(num_full * chunk_rows, rem_rows, masked, carry)
        inter_p, sum_p, bce_p = carry
        inter_ref[...] += inter_p
        sum_ref[...] += sum_p
        bce_ref[...] += bce_p

    if needs_mask:
        last = pl.num_programs(0) - 1

        @pl.when(j != last)
        def _():
            run_block(False)

        @pl.when(j == last)
        def _():
            run_block(True)
    else:
        run_block(False)


def _flatten_map(x):
    flat = jnp.ravel(x)
    if not jnp.issubdtype(flat.dtype, jnp.floating):
        flat = flat.astype(jnp.float32)
    return flat


def localization_detection_bce_dice_loss(predicted_map, predicted_class,
                                         actual_map, actual_class,
                                         detection_loss_weight=0.2,
                                         localization_bce_loss_weight=0.2,
                                         dice_loss_weight=0.6,
                                         smooth=1.0):
    pm_flat = _flatten_map(predicted_map)
    am_flat = _flatten_map(actual_map)
    n_map = int(pm_flat.shape[0])

    align = ROW_ALIGN * LANES                       # 1024 elements
    rows = (n_map // align) * ROW_ALIGN
    if rows == 0:
        # Tiny map (<1024 elems): zero-pad to one (8,128) tile.  Zero padding is
        # loss-neutral (pm=am=0 contributes 0 to every accumulated sum).
        pm_flat = jnp.pad(pm_flat, (0, align - n_map))
        am_flat = jnp.pad(am_flat, (0, align - n_map))
        rows = ROW_ALIGN
        tail = 0
    else:
        tail = n_map - rows * LANES                 # < 1024 elements -> JAX epilogue

    pm2d = pm_flat[: rows * LANES].reshape(rows, LANES)
    am2d = am_flat[: rows * LANES].reshape(rows, LANES)

    block_rows = rows if rows <= MAX_BLOCK_ROWS else MAX_BLOCK_ROWS
    num_blocks = pl.cdiv(rows, block_rows)
    needs_mask = (num_blocks * block_rows) != rows
    chunk_rows = min(CHUNK_ROWS, block_rows)

    map_spec = pl.BlockSpec((block_rows, LANES), lambda j: (j, 0))
    acc_spec = pl.BlockSpec((1, LANES), lambda j: (0, 0))   # resident accumulator
    acc_shape = jax.ShapeDtypeStruct((1, LANES), jnp.float32)

    kernel = functools.partial(
        _map_partials_kernel, block_rows=block_rows, total_rows=rows,
        chunk_rows=chunk_rows, needs_mask=needs_mask)

    out_i, out_s, out_b = pl.pallas_call(
        kernel,
        out_shape=(acc_shape, acc_shape, acc_shape),
        grid_spec=pltpu.PrefetchScalarGridSpec(
            num_scalar_prefetch=0,
            grid=(num_blocks,),
            in_specs=[map_spec, map_spec],
            out_specs=(acc_spec, acc_spec, acc_spec)),
        compiler_params=pltpu.CompilerParams(
            dimension_semantics=("arbitrary",),
            vmem_limit_bytes=48 * 1024 * 1024),
    )(pm2d, am2d)

    inter = jnp.sum(out_i)          # sum(pm * am)
    pm_am_sum = jnp.sum(out_s)      # sum(pm) + sum(am)
    bce_pos_sum = jnp.sum(out_b)    # sum of am*log(pm) + (1-am)*log(1-pm)

    # Fold the <1024-element unaligned tail into the sums (no full-array pad copy).
    if tail > 0:
        pm_t = pm_flat[rows * LANES:].astype(jnp.float32)
        am_t = am_flat[rows * LANES:].astype(jnp.float32)
        inter = inter + jnp.sum(pm_t * am_t)
        pm_am_sum = pm_am_sum + jnp.sum(pm_t + am_t)
        bce_pos_sum = bce_pos_sum + jnp.sum(_bce_pos_terms(pm_t, am_t))

    dice = 1.0 - (2.0 * inter + smooth) / (pm_am_sum + smooth)
    loc_bce = -bce_pos_sum / n_map

    # Detection BCE over the tiny O(batch) class tensor in plain JAX.
    pc = predicted_class.reshape(-1).astype(jnp.float32)
    ac = actual_class.reshape(-1).astype(jnp.float32)
    det_bce = -jnp.mean(_bce_pos_terms(pc, ac))

    return (dice * dice_loss_weight
            + loc_bce * localization_bce_loss_weight
            + det_bce * detection_loss_weight)


def _reference_loss(pm, pc, am, ac, det_w=0.2, loc_w=0.2, dice_w=0.6, smooth=1.0):
    pm_f = pm.reshape(-1).astype(jnp.float32)
    am_f = am.reshape(-1).astype(jnp.float32)
    inter = jnp.sum(pm_f * am_f)
    dice = 1.0 - (2.0 * inter + smooth) / (jnp.sum(pm_f) + jnp.sum(am_f) + smooth)

    def bce(p, t):
        lp = jnp.maximum(jnp.log(p), LOG_CLAMP)
        l1p = jnp.maximum(jnp.log(1.0 - p), LOG_CLAMP)
        return jnp.mean(-(t * lp + (1.0 - t) * l1p))

    return dice * dice_w + bce(pm_f, am_f) * loc_w + \
        bce(pc.reshape(-1).astype(jnp.float32),
            ac.reshape(-1).astype(jnp.float32)) * det_w


if __name__ == "__main__":
    key = jax.random.PRNGKey(0)
    k1, k2, k3, k4 = jax.random.split(key, 4)

    # Small case (tiny-map path: single padded (8,128) tile).
    B, C, H, W = 2, 1, 16, 16
    predicted_map = jax.nn.sigmoid(jax.random.normal(k1, (B, C, H, W), jnp.float32))
    actual_map = jax.random.bernoulli(k2, 0.5, (B, C, H, W)).astype(jnp.float32)
    predicted_class = jax.nn.sigmoid(jax.random.normal(k3, (B, 1), jnp.float32))
    actual_class = jax.random.bernoulli(k4, 0.5, (B, 1)).astype(jnp.float32)

    loss = localization_detection_bce_dice_loss(
        predicted_map, predicted_class, actual_map, actual_class)
    loss = jax.block_until_ready(loss)
    ref = _reference_loss(predicted_map, predicted_class, actual_map, actual_class)
    assert jnp.allclose(loss, ref, rtol=1e-5, atol=1e-5), (loss, ref)

    # Single-block case with a remainder chunk and a <1024-element JAX-epilogue tail.
    k5, k6 = jax.random.split(k1)
    H2, W2 = 713, 450   # 2*713*450 = 641700 -> 5008 kernel rows + 676-element tail
    pm_mid = jax.nn.sigmoid(jax.random.normal(k5, (2, 1, H2, W2), jnp.float32))
    am_mid = jax.random.bernoulli(k6, 0.5, (2, 1, H2, W2)).astype(jnp.float32)
    loss_mid = localization_detection_bce_dice_loss(
        pm_mid, predicted_class, am_mid, actual_class)
    loss_mid = jax.block_until_ready(loss_mid)
    ref_mid = _reference_loss(pm_mid, predicted_class, am_mid, actual_class)
    assert jnp.allclose(loss_mid, ref_mid, rtol=1e-4, atol=1e-5), (loss_mid, ref_mid)

    # Multi-block case exercising the pl.when-gated masked last block.
    k7, k8 = jax.random.split(k2)
    H3, W3 = 640, 832   # 2*640*832 = 1064960 -> 8320 rows > 8192 -> 2 blocks, ragged last
    pm_big = jax.nn.sigmoid(jax.random.normal(k7, (2, 1, H3, W3), jnp.float32))
    am_big = jax.random.bernoulli(k8, 0.5, (2, 1, H3, W3)).astype(jnp.float32)
    loss_big = localization_detection_bce_dice_loss(
        pm_big, predicted_class, am_big, actual_class)
    loss_big = jax.block_until_ready(loss_big)
    ref_big = _reference_loss(pm_big, predicted_class, am_big, actual_class)
    assert jnp.allclose(loss_big, ref_big, rtol=1e-4, atol=1e-5), (loss_big, ref_big)

    print("KERNEL_OK")
</pallas_src>

<mosaic_0001>
module attributes {stable_mosaic.version = 11 : i64} {
  func.func @_map_partials_kernel(%arg0: i32, %arg1: memref<8x128xf32, #tpu.memory_space<vmem>>, %arg2: memref<8x128xf32, #tpu.memory_space<vmem>>, %arg3: memref<1x128xf32, #tpu.memory_space<vmem>>, %arg4: memref<1x128xf32, #tpu.memory_space<vmem>>, %arg5: memref<1x128xf32, #tpu.memory_space<vmem>>) attributes {dimension_semantics = [#tpu.dimension_semantics<arbitrary>], iteration_bounds = array<i64: 1>, scalar_prefetch = 0 : i64, scratch_operands = 0 : i64, tpu.core_type = #tpu.core_type<tc>, window_params = [{transform_indices = @transform_0, window_bounds = array<i64: 8, 128>}, {transform_indices = @transform_1, window_bounds = array<i64: 8, 128>}, {pipeline_mode = #tpu.pipeline_mode<synchronous>, transform_indices = @transform_2, window_bounds = array<i64: 1, 128>}, {pipeline_mode = #tpu.pipeline_mode<synchronous>, transform_indices = @transform_3, window_bounds = array<i64: 1, 128>}, {pipeline_mode = #tpu.pipeline_mode<synchronous>, transform_indices = @transform_4, window_bounds = array<i64: 1, 128>}]} {
    %c0_i32 = arith.constant 0 : i32
    %0 = arith.cmpi eq, %arg0, %c0_i32 : i32
    %1 = arith.extui %0 : i1 to i32
    %c0_i32_0 = arith.constant 0 : i32
    %2 = arith.cmpi ne, %1, %c0_i32_0 : i32
    scf.if %2 {
      %cst_21 = arith.constant 0.000000e+00 : f32
      %41 = vector.broadcast %cst_21 : f32 to vector<1x128xf32>
      %c0_22 = arith.constant 0 : index
      %c0_23 = arith.constant 0 : index
      %42 = vector.load %arg3[%c0_22, %c0_23] : memref<1x128xf32, #tpu.memory_space<vmem>>, vector<1x128xf32>
      tpu.vector_store %arg3[%c0_22, %c0_23], %41 {strides = array<i32>} : memref<1x128xf32, #tpu.memory_space<vmem>>, vector<1x128xf32>,
      %cst_24 = arith.constant 0.000000e+00 : f32
      %43 = vector.broadcast %cst_24 : f32 to vector<1x128xf32>
      %c0_25 = arith.constant 0 : index
      %c0_26 = arith.constant 0 : index
      %44 = vector.load %arg4[%c0_25, %c0_26] : memref<1x128xf32, #tpu.memory_space<vmem>>, vector<1x128xf32>
      tpu.vector_store %arg4[%c0_25, %c0_26], %43 {strides = array<i32>} : memref<1x128xf32, #tpu.memory_space<vmem>>, vector<1x128xf32>,
      %cst_27 = arith.constant 0.000000e+00 : f32
      %45 = vector.broadcast %cst_27 : f32 to vector<1x128xf32>
      %c0_28 = arith.constant 0 : index
      %c0_29 = arith.constant 0 : index
      %46 = vector.load %arg5[%c0_28, %c0_29] : memref<1x128xf32, #tpu.memory_space<vmem>>, vector<1x128xf32>
      tpu.vector_store %arg5[%c0_28, %c0_29], %45 {strides = array<i32>} : memref<1x128xf32, #tpu.memory_space<vmem>>, vector<1x128xf32>,
    } else {
    }
    %cst = arith.constant 0.000000e+00 : f32
    %3 = vector.broadcast %cst : f32 to vector<1x128xf32>
    %c0_i32_1 = arith.constant 0 : i32
    %c8_i32 = arith.constant 8 : i32
    %4 = arith.muli %c0_i32_1, %c8_i32 : i32
    %5 = tpu.assume_multiple %4, 8 : i32
    %6 = arith.index_cast %5 : i32 to index
    %c0 = arith.constant 0 : index
    %7 = vector.load %arg1[%6, %c0] : memref<8x128xf32, #tpu.memory_space<vmem>>, vector<8x128xf32>
    %8 = arith.index_cast %5 : i32 to index
    %c0_2 = arith.constant 0 : index
    %9 = vector.load %arg2[%8, %c0_2] : memref<8x128xf32, #tpu.memory_space<vmem>>, vector<8x128xf32>
    %10 = arith.mulf %7, %9 : vector<8x128xf32>
    %cst_3 = arith.constant dense<0.000000e+00> : vector<128xf32>
    %11 = vector.multi_reduction <add>, %10, %cst_3 [0] : vector<8x128xf32> to vector<128xf32>
    %12 = vector.shape_cast %11 : vector<128xf32> to vector<1x128xf32>
    %13 = arith.addf %3, %12 : vector<1x128xf32>
    %14 = arith.addf %7, %9 : vector<8x128xf32>
    %cst_4 = arith.constant dense<0.000000e+00> : vector<128xf32>
    %15 = vector.multi_reduction <add>, %14, %cst_4 [0] : vector<8x128xf32> to vector<128xf32>
    %16 = vector.shape_cast %15 : vector<128xf32> to vector<1x128xf32>
    %17 = arith.addf %3, %16 : vector<1x128xf32>
    %18 = math.log %7 : vector<8x128xf32>
    %cst_5 = arith.constant -1.000000e+02 : f32
    %19 = vector.broadcast %cst_5 : f32 to vector<8x128xf32>
    %20 = arith.maximumf %18, %19 : vector<8x128xf32>
    %cst_6 = arith.constant 1.000000e+00 : f32
    %21 = vector.broadcast %cst_6 : f32 to vector<8x128xf32>
    %22 = arith.subf %21, %7 : vector<8x128xf32>
    %23 = math.log %22 : vector<8x128xf32>
    %cst_7 = arith.constant -1.000000e+02 : f32
    %24 = vector.broadcast %cst_7 : f32 to vector<8x128xf32>
    %25 = arith.maximumf %23, %24 : vector<8x128xf32>
    %26 = arith.subf %20, %25 : vector<8x128xf32>
    %27 = arith.mulf %9, %26 : vector<8x128xf32>
    %28 = arith.addf %27, %25 : vector<8x128xf32>
    %cst_8 = arith.constant dense<0.000000e+00> : vector<128xf32>
    %29 = vector.multi_reduction <add>, %28, %cst_8 [0] : vector<8x128xf32> to vector<128xf32>
    %30 = vector.shape_cast %29 : vector<128xf32> to vector<1x128xf32>
    %31 = arith.addf %3, %30 : vector<1x128xf32>
    %c1_i32 = arith.constant 1 : i32
    %c0_9 = arith.constant 0 : index
    %c0_10 = arith.constant 0 : index
    %32 = vector.load %arg3[%c0_9, %c0_10] : memref<1x128xf32, #tpu.memory_space<vmem>>, vector<1x128xf32>
    %33 = arith.addf %32, %13 : vector<1x128xf32>
    %c0_11 = arith.constant 0 : index
    %c0_12 = arith.constant 0 : index
    %34 = vector.load %arg3[%c0_11, %c0_12] : memref<1x128xf32, #tpu.memory_space<vmem>>, vector<1x128xf32>
    tpu.vector_store %arg3[%c0_11, %c0_12], %33 {strides = array<i32>} : memref<1x128xf32, #tpu.memory_space<vmem>>, vector<1x128xf32>,
    %c0_13 = arith.constant 0 : index
    %c0_14 = arith.constant 0 : index
    %35 = vector.load %arg4[%c0_13, %c0_14] : memref<1x128xf32, #tpu.memory_space<vmem>>, vector<1x128xf32>
    %36 = arith.addf %35, %17 : vector<1x128xf32>
    %c0_15 = arith.constant 0 : index
    %c0_16 = arith.constant 0 : index
    %37 = vector.load %arg4[%c0_15, %c0_16] : memref<1x128xf32, #tpu.memory_space<vmem>>, vector<1x128xf32>
    tpu.vector_store %arg4[%c0_15, %c0_16], %36 {strides = array<i32>} : memref<1x128xf32, #tpu.memory_space<vmem>>, vector<1x128xf32>,
    %c0_17 = arith.constant 0 : index
    %c0_18 = arith.constant 0 : index
    %38 = vector.load %arg5[%c0_17, %c0_18] : memref<1x128xf32, #tpu.memory_space<vmem>>, vector<1x128xf32>
    %39 = arith.addf %38, %31 : vector<1x128xf32>
    %c0_19 = arith.constant 0 : index
    %c0_20 = arith.constant 0 : index
    %40 = vector.load %arg5[%c0_19, %c0_20] : memref<1x128xf32, #tpu.memory_space<vmem>>, vector<1x128xf32>
    tpu.vector_store %arg5[%c0_19, %c0_20], %39 {strides = array<i32>} : memref<1x128xf32, #tpu.memory_space<vmem>>, vector<1x128xf32>,
    return
  }
  func.func @transform_0(%arg0: i32) -> (i32, i32) {
    %c0_i32 = arith.constant 0 : i32
    %c0_i32_0 = arith.constant 0 : i32
    return %arg0, %c0_i32 : i32, i32
  }
  func.func @transform_1(%arg0: i32) -> (i32, i32) {
    %c0_i32 = arith.constant 0 : i32
    %c0_i32_0 = arith.constant 0 : i32
    return %arg0, %c0_i32 : i32, i32
  }
  func.func @transform_2(%arg0: i32) -> (i32, i32) {
    %c0_i32 = arith.constant 0 : i32
    %c0_i32_0 = arith.constant 0 : i32
    %c0_i32_1 = arith.constant 0 : i32
    return %c0_i32, %c0_i32_0 : i32, i32
  }
  func.func @transform_3(%arg0: i32) -> (i32, i32) {
    %c0_i32 = arith.constant 0 : i32
    %c0_i32_0 = arith.constant 0 : i32
    %c0_i32_1 = arith.constant 0 : i32
    return %c0_i32, %c0_i32_0 : i32, i32
  }
  func.func @transform_4(%arg0: i32) -> (i32, i32) {
    %c0_i32 = arith.constant 0 : i32
    %c0_i32_0 = arith.constant 0 : i32
    %c0_i32_1 = arith.constant 0 : i32
    return %c0_i32, %c0_i32_0 : i32, i32
  }
}

</mosaic_0001>

<llo_original>
// kernel: tpu_custom_call.1
$region0: #{tpu_custom_call.1}
  #allocation0 [shape = 'u32[]', space=smem, size = 0x4, offset = 0x4, fixed_abs, tag = 'smem constant byte address 0x4 - core index']
  #allocation1 [shape = 'u32[144,128]{1,0:T(1,128)}', space=vmem, size = 0x12000, scoped, tag = 'internal scratch']
  %s0 = inlined_call_operand.hbm [shape: f32[8,128], index: 0, kind: input, shape index: {}]
  %s1 = inlined_call_operand.hbm [shape: f32[8,128], index: 1, kind: input, shape index: {}]
  %s2 = inlined_call_operand.hbm [shape: f32[1,128], index: 2, kind: output, shape index: {0}]
  %s3 = inlined_call_operand.hbm [shape: f32[1,128], index: 3, kind: output, shape index: {1}]
  %s4 = inlined_call_operand.hbm [shape: f32[1,128], index: 4, kind: output, shape index: {2}]
  %5 = xla_tuple %s2, %s3, %s4
  %s6 = sld [smem:[#allocation0]]
  $region46: #{tpu_custom_call.1} parent=0
    _
  %s8 = ssub.s32 1, %s6
  %s9 = scalar_select 0, %s8, %s6
  $region1: #{tpu_custom_call.1} parent=0
    #allocation2 [shape = 'u8[4096]{0}', space=vmem, size = 0x1000, scoped, tag = 'input window, operand 0, single buffered']
    #allocation3 [shape = 's32[1]{0}', space=sflag, size = 0x4, scoped, tag = 'scoped memory for tpu_custom_call.1']
    #allocation4 [shape = 's32[1]{0}', space=sflag, size = 0x4, scoped, tag = 'scoped memory for tpu_custom_call.1']
    #allocation5 [shape = 'u8[4096]{0}', space=vmem, size = 0x1000, scoped, tag = 'input window, operand 1, single buffered']
    #allocation6 [shape = 's32[1]{0}', space=sflag, size = 0x4, scoped, tag = 'scoped memory for tpu_custom_call.1']
    #allocation7 [shape = 'u8[512]{0}', space=vmem, size = 0x400, scoped, tag = 'output window, operand 0, single buffered']
    #allocation8 [shape = 'u8[512]{0}', space=vmem, size = 0x400, scoped, tag = 'output window, operand 1, single buffered']
    #allocation9 [shape = 's32[1]{0}', space=sflag, size = 0x4, scoped, tag = 'scoped memory for tpu_custom_call.1']
    #allocation10 [shape = 'u8[512]{0}', space=vmem, size = 0x400, scoped, tag = 'output window, operand 2, single buffered']
    %10 = vsyncpa [#allocation3], 0
    %11 = vsyncpa [#allocation6], 0
    %12 = vsyncpa [#allocation4], 0
    %13 = vsyncpa [#allocation9], 0
    // Predicated region
    $region2: #{tpu_custom_call.1} parent=1 // pred_check
      _
    $region3: #{tpu_custom_call.1} parent=1 // pred_check_branch
      %15 = sbr.rel (0) target = $region5
    $region4: #{tpu_custom_call.1} parent=1 // pred_region
      %s17 = ssub.s32 128, 128
      %18 = vsyncadd [#allocation3], %s17
      %s20 = sshll.u32 [#allocation2], 4
      %s21 = int_to_ptr.vmem [resolvable:$true] %s20
      %23 = dma.hbm_to_vmem [thread:$0]  %s0, 128, %s21, [#allocation3]
    $region5: #{tpu_custom_call.1} parent=1 // pred_fallthru
      _
    // Predicated region
    $region6: #{tpu_custom_call.1} parent=1 // pred_check
      _
    $region7: #{tpu_custom_call.1} parent=1 // pred_check_branch
      %25 = sbr.rel (0) target = $region9
    $region8: #{tpu_custom_call.1} parent=1 // pred_region
      %s27 = ssub.s32 128, 128
      %28 = vsyncadd [#allocation6], %s27
      %s30 = sshll.u32 [#allocation5], 4
      %s31 = int_to_ptr.vmem [resolvable:$true] %s30
      %33 = dma.hbm_to_vmem [thread:$0]  %s1, 128, %s31, [#allocation6]
    $region9: #{tpu_custom_call.1} parent=1 // pred_fallthru
      _
    // Predicated region
    $region10: #{tpu_custom_call.1} parent=1 // pred_check
      _
    $region11: #{tpu_custom_call.1} parent=1 // pred_check_branch
      %35 = sbr.rel (0) target = $region13
    $region12: #{tpu_custom_call.1} parent=1 // pred_region
      %36 = dma.done [#allocation3], 128
    $region13: #{tpu_custom_call.1} parent=1 // pred_fallthru
      _
    // Predicated region
    $region14: #{tpu_custom_call.1} parent=1 // pred_check
      _
    $region15: #{tpu_custom_call.1} parent=1 // pred_check_branch
      %38 = sbr.rel (0) target = $region17
    $region16: #{tpu_custom_call.1} parent=1 // pred_region
      %39 = dma.done [#allocation6], 128
    $region17: #{tpu_custom_call.1} parent=1 // pred_fallthru
      _
    %p40 = scmp.eq.s32.totalorder 0, 0
    // Predicated region
    $region18: #{tpu_custom_call.1} parent=1 // pred_check
      %p41 = pneg %p40
    $region19: #{tpu_custom_call.1} parent=1 // pred_check_branch
      %43 = sbr.rel (%p41) target = $region21
    $region20: #{tpu_custom_call.1} parent=1 // pred_region
      %44 = vst [vmem:[#allocation7] sm:$0x1] 0.0
      %45 = vst [vmem:[#allocation8] sm:$0x1] 0.0
      %46 = vst [vmem:[#allocation10] sm:$0x1] 0.0
    $region21: #{tpu_custom_call.1} parent=1 // pred_fallthru
      _
    %v47 = vld [vmem:[#allocation2] sm:$0xff]
    %v48 = vld [vmem:[#allocation5] sm:$0xff]
    %v49 = vmul.f32 %v47, %v48
    %v50 = vrot.slane %v49, 4
    %v51 = vadd.f32 %v49, %v50
    %v52 = vrot.slane %v51, 2
    %v53 = vadd.f32 %v51, %v52
    %v54 = vrot.slane %v53, 1
    %v55 = vadd.f32 %v53, %v54
    %v56 = vadd.f32 %v55, 0.0
    %v57 = vadd.f32 %v47, %v48
    %v58 = vrot.slane %v57, 4
    %v59 = vadd.f32 %v57, %v58
    %v60 = vrot.slane %v59, 2
    %v61 = vadd.f32 %v59, %v60
    %v62 = vrot.slane %v61, 1
    %v63 = vadd.f32 %v61, %v62
    %v64 = vadd.f32 %v63, 0.0
    %v65 = vlog2.pop %v47
    %v66 = vmul.f32 %v65, 0.6931472
    %v67 = vmax.f32 %v66, -100.0
    %v68 = vsub.f32 1.0, %v47
    %v69 = vlog2.pop %v68
    %v70 = vmul.f32 %v69, 0.6931472
    %v71 = vmax.f32 %v70, -100.0
    %v72 = vsub.f32 %v67, %v71
    %v73 = vmul.f32 %v48, %v72
    %v74 = vadd.f32 %v73, %v71
    %v75 = vrot.slane %v74, 4
    %v76 = vadd.f32 %v74, %v75
    %v77 = vrot.slane %v76, 2
    %v78 = vadd.f32 %v76, %v77
    %v79 = vrot.slane %v78, 1
    %v80 = vadd.f32 %v78, %v79
    %v81 = vadd.f32 %v80, 0.0
    %v82 = vld [vmem:[#allocation7] sm:$0x1]
    %v83 = vadd.f32 %v82, %v56
    %84 = vst [vmem:[#allocation7] sm:$0x1] %v83
    %v85 = vld [vmem:[#allocation8] sm:$0x1]
    %v86 = vadd.f32 %v85, %v64
    %87 = vst [vmem:[#allocation8] sm:$0x1] %v86
    %v88 = vld [vmem:[#allocation10] sm:$0x1]
    %v89 = vadd.f32 %v88, %v81
    %90 = vst [vmem:[#allocation10] sm:$0x1] %v89
    // Predicated region
    $region22: #{tpu_custom_call.1} parent=1 // pred_check
      _
    $region23: #{tpu_custom_call.1} parent=1 // pred_check_branch
      %92 = sbr.rel (0) target = $region25
    $region24: #{tpu_custom_call.1} parent=1 // pred_region
      %s94 = ssub.s32 16, 16
      %95 = vsyncadd [#allocation4], %s94
      %s97 = sshll.u32 [#allocation7], 4
      %s98 = int_to_ptr.vmem [resolvable:$true] %s97
      %100 = dma.vmem_to_hbm [thread:$0]  %s98, 16, %s2, [#allocation4]
    $region25: #{tpu_custom_call.1} parent=1 // pred_fallthru
      _
    // Predicated region
    $region26: #{tpu_custom_call.1} parent=1 // pred_check
      _
    $region27: #{tpu_custom_call.1} parent=1 // pred_check_branch
      %102 = sbr.rel (0) target = $region29
    $region28: #{tpu_custom_call.1} parent=1 // pred_region
      %s104 = ssub.s32 16, 16
      %105 = vsyncadd [#allocation9], %s104
      %s107 = sshll.u32 [#allocation8], 4
      %s108 = int_to_ptr.vmem [resolvable:$true] %s107
      %110 = dma.vmem_to_hbm [thread:$0]  %s108, 16, %s3, [#allocation9]
    $region29: #{tpu_custom_call.1} parent=1 // pred_fallthru
      _
    // Predicated region
    $region30: #{tpu_custom_call.1} parent=1 // pred_check
      _
    $region31: #{tpu_custom_call.1} parent=1 // pred_check_branch
      %112 = sbr.rel (0) target = $region33
    $region32: #{tpu_custom_call.1} parent=1 // pred_region
      %s114 = ssub.s32 16, 16
      %115 = vsyncadd [#allocation9], %s114
      %s117 = sshll.u32 [#allocation10], 4
      %s118 = int_to_ptr.vmem [resolvable:$true] %s117
      %120 = dma.vmem_to_hbm [thread:$0]  %s118, 16, %s4, [#allocation9]
    $region33: #{tpu_custom_call.1} parent=1 // pred_fallthru
      _
    // Predicated region
    $region34: #{tpu_custom_call.1} parent=1 // pred_check
      _
    $region35: #{tpu_custom_call.1} parent=1 // pred_check_branch
      %122 = sbr.rel (0) target = $region37
    $region36: #{tpu_custom_call.1} parent=1 // pred_region
      %123 = dma.done [#allocation4], 16
    $region37: #{tpu_custom_call.1} parent=1 // pred_fallthru
      _
    // Predicated region
    $region38: #{tpu_custom_call.1} parent=1 // pred_check
      _
    $region39: #{tpu_custom_call.1} parent=1 // pred_check_branch
      %125 = sbr.rel (0) target = $region41
    $region40: #{tpu_custom_call.1} parent=1 // pred_region
      %126 = dma.done [#allocation9], 16
    $region41: #{tpu_custom_call.1} parent=1 // pred_fallthru
      _
    // Predicated region
    $region42: #{tpu_custom_call.1} parent=1 // pred_check
      _
    $region43: #{tpu_custom_call.1} parent=1 // pred_check_branch
      %128 = sbr.rel (0) target = $region45
    $region44: #{tpu_custom_call.1} parent=1 // pred_region
      %129 = dma.done [#allocation9], 16
    $region45: #{tpu_custom_call.1} parent=1 // pred_fallthru
      _
    %130 = vsyncpa [#allocation3], 1
    %131 = vsyncpa [#allocation6], 1
    %132 = vsyncpa [#allocation4], 1
    %133 = vsyncpa [#allocation9], 1

</llo_original>
